<compile_context>
chip_gen: v5e
topology: v5e:2x2
jax: 0.10.0
libtpu: 0.0.40
codegen_flags: <defaults>
</compile_context>

<pallas_src>
import jax
import jax.numpy as jnp
from jax.experimental import pallas as pl
from jax.experimental.pallas import tpu as pltpu

LN_EPS = 1e-5  # nn.LayerNorm default

# Set to jnp.bfloat16 to shorten the MXU pass (per perf review); kept f32 so the
# kernel matches the PyTorch f32 forward within 2e-4.
MATMUL_DTYPE = jnp.float32


def _luconv_kernel(lam_ref, p_ref, w_ref, out_ref):
    # lam_ref : SMEM (1,)              lambda = epoch / max_epoch
    # p_ref   : VMEM (Kpad, N*H*W)     im2col patches (+ones row, +zero pad rows)
    # w_ref   : VMEM (Cout, Kpad)      conv weights (+bias column, +zero pad cols)
    # out_ref : VMEM (N, Cout, H*W)    lane-dense output
    n_samples, cout, hw = out_ref.shape
    inv_n = 1.0 / float(cout * hw)
    lam = lam_ref[0]

    # Whole batch's 3x3 conv (bias included via the ones row): one MXU matmul,
    # lane-dense (Cout, N*H*W) accumulator.
    acc = jnp.dot(w_ref[...], p_ref[...],
                  preferred_element_type=jnp.float32)        # (Cout, N*HW)

    # Per-sample LayerNorm over [C,H,W] + blend, on static lane-aligned slices
    # (HW = 256 is a multiple of 128 -> no relayout, unmasked stores).
    for n in range(n_samples):  # static, N is tiny
        ys = acc[:, n * hw:(n + 1) * hw]                     # (Cout, HW)
        mean = jnp.sum(ys) * inv_n
        c = ys - mean
        var = jnp.sum(c * c) * inv_n                         # two-pass variance
        y = c * jax.lax.rsqrt(var + LN_EPS)
        # (1-lam)*relu(y) + lam*y  ==  y * where(y > 0, 1, lam)
        out_ref[n] = (y * jnp.where(y > 0, jnp.float32(1.0), lam)).astype(out_ref.dtype)


@jax.jit
def luconv_forward(x_nchw, weight_hwio, bias, lam):
    """x_nchw: (N, Cin, H, W). Returns (N, Cout, H, W) matching PyTorch LUConv."""
    N, cin, H, W = x_nchw.shape
    cout = weight_hwio.shape[-1]
    hw = H * W
    k_conv = 9 * cin
    k = k_conv + 1                       # +1 ones row for the folded bias
    k_pad = -(-k // 8) * 8               # pad K to a multiple of 8 (f32 sublanes)

    # Layout requirements of the lane-dense kernel at these shapes.
    assert hw % 128 == 0 and cout % 8 == 0

    # im2col in XLA (cheap at these sizes): K ordering = (dy*3+dx)*Cin + ci,
    # lane ordering = n*H*W + h*W + w. Ones row + zero pad folded into one concat.
    x_pad = jnp.pad(x_nchw.astype(jnp.float32),
                    ((0, 0), (0, 0), (1, 1), (1, 1)))
    taps = [x_pad[:, :, dy:dy + H, dx:dx + W]
            for dy in range(3) for dx in range(3)]            # 9 x (N,Cin,H,W)
    patches = (jnp.stack(taps, axis=0)                        # (9,N,Cin,H,W)
               .transpose(0, 2, 1, 3, 4)                      # (9,Cin,N,H,W)
               .reshape(k_conv, N * hw))                      # (9*Cin, N*HW)
    patches = jnp.concatenate(
        [patches,
         jnp.ones((1, N * hw), jnp.float32),                  # bias row
         jnp.zeros((k_pad - k, N * hw), jnp.float32)],        # K padding
        axis=0).astype(MATMUL_DTYPE)                          # (Kpad, N*HW)

    # Weights (3,3,Cin,Cout) -> (Cout, 9*Cin) with the same K ordering, then
    # append the bias column and zero padding columns.
    w_mat = weight_hwio.astype(jnp.float32).reshape(k_conv, cout).T
    w_full = jnp.concatenate(
        [w_mat,
         bias.astype(jnp.float32).reshape(cout, 1),
         jnp.zeros((cout, k_pad - k), jnp.float32)],
        axis=1).astype(MATMUL_DTYPE)                          # (Cout, Kpad)

    lam_arr = jnp.reshape(lam.astype(jnp.float32), (1,))

    cost = pl.CostEstimate(
        flops=2 * cout * k_pad * N * hw + 8 * N * cout * hw,
        transcendentals=N,
        bytes_accessed=(patches.size * patches.dtype.itemsize
                        + w_full.size * w_full.dtype.itemsize
                        + N * cout * hw * 4),
    )

    out_flat = pl.pallas_call(
        _luconv_kernel,
        out_shape=jax.ShapeDtypeStruct((N, cout, hw), jnp.float32),
        grid_spec=pltpu.PrefetchScalarGridSpec(
            num_scalar_prefetch=0,
            grid=(1,),                                        # single fused step
            in_specs=[
                pl.BlockSpec(memory_space=pltpu.SMEM),                    # lambda
                pl.BlockSpec((k_pad, N * hw), lambda i: (0, 0)),          # patches
                pl.BlockSpec((cout, k_pad), lambda i: (0, 0)),            # weights+bias
            ],
            out_specs=pl.BlockSpec((N, cout, hw), lambda i: (0, 0, 0)),
        ),
        compiler_params=pltpu.CompilerParams(
            dimension_semantics=("arbitrary",)),
        cost_estimate=cost,
    )(lam_arr, patches, w_full)

    # (N, Cout, H*W) -> (N, Cout, H, W): contiguous reshape, no transpose.
    return out_flat.reshape(N, cout, H, W)


def _reference(x_nchw, weight_hwio, bias, lam):
    """Pure-JAX reference mirroring the PyTorch module (for sanity check)."""
    y = jax.lax.conv_general_dilated(
        x_nchw, weight_hwio, window_strides=(1, 1), padding="SAME",
        dimension_numbers=("NCHW", "HWIO", "NCHW"))
    y = y + bias[None, :, None, None]
    mean = jnp.mean(y, axis=(1, 2, 3), keepdims=True)
    var = jnp.mean((y - mean) ** 2, axis=(1, 2, 3), keepdims=True)
    yn = (y - mean) * jax.lax.rsqrt(var + LN_EPS)
    return (1.0 - lam) * jnp.maximum(yn, 0.0) + lam * yn


if __name__ == "__main__":
    # Shapes consistent with LUConv(in_chan=4, out_chan=8, img_size=16, act='relu')
    N, CIN, COUT, IMG = 2, 4, 8, 16
    key = jax.random.PRNGKey(0)
    kx, kw, kb = jax.random.split(key, 3)

    x = jax.random.normal(kx, (N, CIN, IMG, IMG), dtype=jnp.float32)
    # Conv params stored directly in HWIO layout (3, 3, Cin, Cout).
    weight = jax.random.normal(kw, (3, 3, CIN, COUT), dtype=jnp.float32) * 0.1
    bias = jax.random.normal(kb, (COUT,), dtype=jnp.float32) * 0.1

    epoch, max_epoch = 3.0, 10.0
    lam = jnp.float32(epoch / max_epoch)

    out = luconv_forward(x, weight, bias, lam)
    out = jax.block_until_ready(out)

    ref = _reference(x, weight, bias, lam)
    assert out.shape == (N, COUT, IMG, IMG)
    assert jnp.allclose(out, ref, atol=2e-4, rtol=2e-4), "mismatch vs reference"

    print("KERNEL_OK")
</pallas_src>

<mosaic_0001>
module attributes {stable_mosaic.version = 11 : i64} {
  func.func @_luconv_kernel(%arg0: i32, %arg1: memref<1xf32, #tpu.memory_space<smem>>, %arg2: memref<40x512xf32, #tpu.memory_space<vmem>>, %arg3: memref<8x40xf32, #tpu.memory_space<vmem>>, %arg4: memref<2x8x256xf32, #tpu.memory_space<vmem>>) attributes {dimension_semantics = [#tpu.dimension_semantics<arbitrary>], iteration_bounds = array<i64: 1>, scalar_prefetch = 0 : i64, scratch_operands = 0 : i64, tpu.core_type = #tpu.core_type<tc>, window_params = [{transform_indices = @transform_0, window_bounds = array<i64: 1>}, {pipeline_mode = #tpu.pipeline_mode<synchronous>, transform_indices = @transform_1, window_bounds = array<i64: 40, 512>}, {pipeline_mode = #tpu.pipeline_mode<synchronous>, transform_indices = @transform_2, window_bounds = array<i64: 8, 40>}, {pipeline_mode = #tpu.pipeline_mode<synchronous>, transform_indices = @transform_3, window_bounds = array<i64: 2, 8, 256>}]} {
    %c0 = arith.constant 0 : index
    %0 = memref.load %arg1[%c0] : memref<1xf32, #tpu.memory_space<smem>>
    %c0_0 = arith.constant 0 : index
    %c0_1 = arith.constant 0 : index
    %1 = vector.load %arg3[%c0_0, %c0_1] : memref<8x40xf32, #tpu.memory_space<vmem>>, vector<8x40xf32>
    %c0_2 = arith.constant 0 : index
    %c0_3 = arith.constant 0 : index
    %2 = vector.load %arg2[%c0_2, %c0_3] : memref<40x512xf32, #tpu.memory_space<vmem>>, vector<40x512xf32>
    %cst = arith.constant dense<0.000000e+00> : vector<8x512xf32>
    %3 = tpu.matmul %1, %2, %cst {dimension_numbers = #tpu.dot_dimension_numbers<[1], [0], [0], [1], [0, 0, 1, 1], [], []>} : vector<8x40xf32>, vector<40x512xf32>, vector<8x512xf32> -> vector<8x512xf32>
    %4 = vector.extract_strided_slice %3 {offsets = [0, 0], sizes = [8, 256], strides = [1, 1]} : vector<8x512xf32> to vector<8x256xf32>
    %5 = vector.shape_cast %4 : vector<8x256xf32> to vector<1x8x256xf32>
    %cst_4 = arith.constant dense<0.000000e+00> : vector<1xf32>
    %6 = vector.multi_reduction <add>, %5, %cst_4 [1, 2] : vector<1x8x256xf32> to vector<1xf32>
    %7 = vector.shape_cast %6 : vector<1xf32> to vector<1x1x1xf32>
    %8 = vector.extract %7[0, 0, 0] : f32 from vector<1x1x1xf32>
    %cst_5 = arith.constant 4.8828125E-4 : f32
    %9 = arith.mulf %8, %cst_5 : f32
    %10 = vector.broadcast %9 : f32 to vector<8x256xf32>
    %11 = arith.subf %4, %10 : vector<8x256xf32>
    %12 = arith.mulf %11, %11 : vector<8x256xf32>
    %13 = vector.shape_cast %12 : vector<8x256xf32> to vector<1x8x256xf32>
    %cst_6 = arith.constant dense<0.000000e+00> : vector<1xf32>
    %14 = vector.multi_reduction <add>, %13, %cst_6 [1, 2] : vector<1x8x256xf32> to vector<1xf32>
    %15 = vector.shape_cast %14 : vector<1xf32> to vector<1x1x1xf32>
    %16 = vector.extract %15[0, 0, 0] : f32 from vector<1x1x1xf32>
    %cst_7 = arith.constant 4.8828125E-4 : f32
    %17 = arith.mulf %16, %cst_7 : f32
    %cst_8 = arith.constant 9.99999974E-6 : f32
    %18 = arith.addf %17, %cst_8 : f32
    %19 = math.rsqrt %18 : f32
    %20 = vector.broadcast %19 : f32 to vector<8x256xf32>
    %21 = arith.mulf %11, %20 : vector<8x256xf32>
    %cst_9 = arith.constant 0.000000e+00 : f32
    %22 = vector.broadcast %cst_9 : f32 to vector<8x256xf32>
    %23 = arith.cmpf ogt, %21, %22 : vector<8x256xf32>
    %cst_10 = arith.constant 1.000000e+00 : f32
    %24 = vector.broadcast %cst_10 : f32 to vector<8x256xf32>
    %25 = vector.broadcast %0 : f32 to vector<8x256xf32>
    %26 = arith.select %23, %24, %25 : vector<8x256xi1>, vector<8x256xf32>
    %27 = arith.mulf %21, %26 : vector<8x256xf32>
    %c0_11 = arith.constant 0 : index
    %c0_12 = arith.constant 0 : index
    %c0_13 = arith.constant 0 : index
    %28 = vector.load %arg4[%c0_11, %c0_12, %c0_13] : memref<2x8x256xf32, #tpu.memory_space<vmem>>, vector<1x8x256xf32>
    %29 = vector.shape_cast %28 : vector<1x8x256xf32> to vector<8x256xf32>
    %30 = vector.shape_cast %27 : vector<8x256xf32> to vector<1x8x256xf32>
    tpu.vector_store %arg4[%c0_11, %c0_12, %c0_13], %30 {strides = array<i32>} : memref<2x8x256xf32, #tpu.memory_space<vmem>>, vector<1x8x256xf32>,
    %31 = vector.extract_strided_slice %3 {offsets = [0, 256], sizes = [8, 256], strides = [1, 1]} : vector<8x512xf32> to vector<8x256xf32>
    %32 = vector.shape_cast %31 : vector<8x256xf32> to vector<1x8x256xf32>
    %cst_14 = arith.constant dense<0.000000e+00> : vector<1xf32>
    %33 = vector.multi_reduction <add>, %32, %cst_14 [1, 2] : vector<1x8x256xf32> to vector<1xf32>
    %34 = vector.shape_cast %33 : vector<1xf32> to vector<1x1x1xf32>
    %35 = vector.extract %34[0, 0, 0] : f32 from vector<1x1x1xf32>
    %cst_15 = arith.constant 4.8828125E-4 : f32
    %36 = arith.mulf %35, %cst_15 : f32
    %37 = vector.broadcast %36 : f32 to vector<8x256xf32>
    %38 = arith.subf %31, %37 : vector<8x256xf32>
    %39 = arith.mulf %38, %38 : vector<8x256xf32>
    %40 = vector.shape_cast %39 : vector<8x256xf32> to vector<1x8x256xf32>
    %cst_16 = arith.constant dense<0.000000e+00> : vector<1xf32>
    %41 = vector.multi_reduction <add>, %40, %cst_16 [1, 2] : vector<1x8x256xf32> to vector<1xf32>
    %42 = vector.shape_cast %41 : vector<1xf32> to vector<1x1x1xf32>
    %43 = vector.extract %42[0, 0, 0] : f32 from vector<1x1x1xf32>
    %cst_17 = arith.constant 4.8828125E-4 : f32
    %44 = arith.mulf %43, %cst_17 : f32
    %cst_18 = arith.constant 9.99999974E-6 : f32
    %45 = arith.addf %44, %cst_18 : f32
    %46 = math.rsqrt %45 : f32
    %47 = vector.broadcast %46 : f32 to vector<8x256xf32>
    %48 = arith.mulf %38, %47 : vector<8x256xf32>
    %cst_19 = arith.constant 0.000000e+00 : f32
    %49 = vector.broadcast %cst_19 : f32 to vector<8x256xf32>
    %50 = arith.cmpf ogt, %48, %49 : vector<8x256xf32>
    %cst_20 = arith.constant 1.000000e+00 : f32
    %51 = vector.broadcast %cst_20 : f32 to vector<8x256xf32>
    %52 = vector.broadcast %0 : f32 to vector<8x256xf32>
    %53 = arith.select %50, %51, %52 : vector<8x256xi1>, vector<8x256xf32>
    %54 = arith.mulf %48, %53 : vector<8x256xf32>
    %c1 = arith.constant 1 : index
    %c0_21 = arith.constant 0 : index
    %c0_22 = arith.constant 0 : index
    %55 = vector.load %arg4[%c1, %c0_21, %c0_22] : memref<2x8x256xf32, #tpu.memory_space<vmem>>, vector<1x8x256xf32>
    %56 = vector.shape_cast %55 : vector<1x8x256xf32> to vector<8x256xf32>
    %57 = vector.shape_cast %54 : vector<8x256xf32> to vector<1x8x256xf32>
    tpu.vector_store %arg4[%c1, %c0_21, %c0_22], %57 {strides = array<i32>} : memref<2x8x256xf32, #tpu.memory_space<vmem>>, vector<1x8x256xf32>,
    return
  }
  func.func @transform_0(%arg0: i32) -> i32 {
    %c0_i32 = arith.constant 0 : i32
    %c0_i32_0 = arith.constant 0 : i32
    return %c0_i32 : i32
  }
  func.func @transform_1(%arg0: i32) -> (i32, i32) {
    %c0_i32 = arith.constant 0 : i32
    %c0_i32_0 = arith.constant 0 : i32
    %c0_i32_1 = arith.constant 0 : i32
    return %c0_i32, %c0_i32_0 : i32, i32
  }
  func.func @transform_2(%arg0: i32) -> (i32, i32) {
    %c0_i32 = arith.constant 0 : i32
    %c0_i32_0 = arith.constant 0 : i32
    %c0_i32_1 = arith.constant 0 : i32
    return %c0_i32, %c0_i32_0 : i32, i32
  }
  func.func @transform_3(%arg0: i32) -> (i32, i32, i32) {
    %c0_i32 = arith.constant 0 : i32
    %c0_i32_0 = arith.constant 0 : i32
    %c0_i32_1 = arith.constant 0 : i32
    %c0_i32_2 = arith.constant 0 : i32
    return %c0_i32, %c0_i32_0, %c0_i32_1 : i32, i32, i32
  }
}

</mosaic_0001>

<llo_original>
// kernel: luconv_forward.1
$region0: #{luconv_forward.1}
  #allocation0 [shape = 'u32[]', space=smem, size = 0x4, offset = 0x4, fixed_abs, tag = 'smem constant byte address 0x4 - core index']
  #allocation1 [shape = 'u32[72,128]{1,0:T(1,128)}', space=vmem, size = 0x9000, scoped, tag = 'internal scratch']
  #allocation2 [shape = 'f32[1]{0:T(128)S(6)}', space=smem, size = 0x200, scoped, tag = 'scoped memory for luconv_forward.1']
  %s0 = inlined_call_operand.<no memory space> [shape: f32[1], index: 0, kind: input, shape index: {}]
  %s1 = inlined_call_operand.vmem [shape: f32[40,512], index: 1, kind: input, shape index: {}]
  %s2 = inlined_call_operand.vmem [shape: f32[8,40], index: 2, kind: input, shape index: {}]
  %s3 = inlined_call_operand.vmem [shape: f32[2,8,256], index: 3, kind: output, shape index: {}]
  %s4 = sld [smem:[#allocation0]]
  $region22: #{luconv_forward.1} parent=0
    _
  %s6 = ssub.s32 1, %s4
  %s7 = scalar_select 0, %s6, %s4
  %8 = sst [smem:[#allocation2]] %s0
  // Predicated region
  $region2: #{luconv_forward.1} parent=0 // pred_check
    _
  $region3: #{luconv_forward.1} parent=0 // pred_check_branch
    %10 = sbr.rel (0) target = $region5
  $region4: #{luconv_forward.1} parent=0 // pred_region
    _
  $region5: #{luconv_forward.1} parent=0 // pred_fallthru
    _
  // Predicated region
  $region6: #{luconv_forward.1} parent=0 // pred_check
    _
  $region7: #{luconv_forward.1} parent=0 // pred_check_branch
    %12 = sbr.rel (0) target = $region9
  $region8: #{luconv_forward.1} parent=0 // pred_region
    _
  $region9: #{luconv_forward.1} parent=0 // pred_fallthru
    _
  // Predicated region
  $region10: #{luconv_forward.1} parent=0 // pred_check
    _
  $region11: #{luconv_forward.1} parent=0 // pred_check_branch
    %14 = sbr.rel (0) target = $region13
  $region12: #{luconv_forward.1} parent=0 // pred_region
    _
  $region13: #{luconv_forward.1} parent=0 // pred_fallthru
    _
  %s15 = sld [smem:[#allocation2]]
  %v16 = vld [vmem:[%s2] sm:$0xff]
  %v17 = vld [vmem:[%s1] sm:$0xff]
  %v18 = vld [vmem:[%s1 + $0x8] sm:$0xff]
  %v19 = vld [vmem:[%s1 + $0x10] sm:$0xff]
  %v20 = vld [vmem:[%s1 + $0x18] sm:$0xff]
  %v21 = vld [vmem:[%s1 + $0x20] sm:$0xff]
  %v22 = vld [vmem:[%s1 + $0x28] sm:$0xff]
  %v23 = vld [vmem:[%s1 + $0x30] sm:$0xff]
  %v24 = vld [vmem:[%s1 + $0x38] sm:$0xff]
  %v25 = vld [vmem:[%s1 + $0x40] sm:$0xff]
  %v26 = vld [vmem:[%s1 + $0x48] sm:$0xff]
  %v27 = vld [vmem:[%s1 + $0x50] sm:$0xff]
  %v28 = vld [vmem:[%s1 + $0x58] sm:$0xff]
  %v29 = vld [vmem:[%s1 + $0x60] sm:$0xff]
  %v30 = vld [vmem:[%s1 + $0x68] sm:$0xff]
  %v31 = vld [vmem:[%s1 + $0x70] sm:$0xff]
  %v32 = vld [vmem:[%s1 + $0x78] sm:$0xff]
  %v33 = vld [vmem:[%s1 + $0x80] sm:$0xff]
  %v34 = vld [vmem:[%s1 + $0x88] sm:$0xff]
  %v35 = vld [vmem:[%s1 + $0x90] sm:$0xff]
  %v36 = vld [vmem:[%s1 + $0x98] sm:$0xff]
  %vm37 = vcmask 326656
  %v39 = vsel %vm37, %v16, 0
  %41 = vmatpush.msra.mxu0 0.0
  %42 = vmatpush.msra.mxu0 0.0
  %43 = vmatpush.msra.mxu0 0.0
  %44 = vmatpush.msra.mxu0 0.0
  %45 = vmatpush.msra.mxu0 0.0
  %46 = vmatpush.msra.mxu0 0.0
  %47 = vmatpush.msra.mxu0 0.0
  %48 = vmatpush.msra.mxu0 0.0
  %49 = vmatpush.msra.mxu0 0.0
  %50 = vmatpush.msra.mxu0 0.0
  %51 = vmatpush.msra.mxu0 0.0
  %52 = vmatpush.msra.mxu0 %v33
  %53 = vmatpush.msra.mxu0 %v29
  %54 = vmatpush.msra.mxu0 %v25
  %55 = vmatpush.msra.mxu0 %v21
  %56 = vmatpush.msra.mxu0 %v17
  %57 = vmatmul.f32.gmra.mxu0 %v39
  %v58 = vpop.f32.mrf.mxu0
  %v59 = vadd.f32 0.0, %v58
  %60 = vdwg.mxu0
  %61 = vmatpush.msra.mxu0 0.0
  %62 = vmatpush.msra.mxu0 0.0
  %63 = vmatpush.msra.mxu0 0.0
  %64 = vmatpush.msra.mxu0 0.0
  %65 = vmatpush.msra.mxu0 0.0
  %66 = vmatpush.msra.mxu0 0.0
  %67 = vmatpush.msra.mxu0 0.0
  %68 = vmatpush.msra.mxu0 0.0
  %69 = vmatpush.msra.mxu0 0.0
  %70 = vmatpush.msra.mxu0 0.0
  %71 = vmatpush.msra.mxu0 0.0
  %72 = vmatpush.msra.mxu0 %v34
  %73 = vmatpush.msra.mxu0 %v30
  %74 = vmatpush.msra.mxu0 %v26
  %75 = vmatpush.msra.mxu0 %v22
  %76 = vmatpush.msra.mxu0 %v18
  %77 = vmatmul.f32.gmra.mxu0 %v39
  %v78 = vpop.f32.mrf.mxu0
  %v79 = vadd.f32 0.0, %v78
  %80 = vdwg.mxu0
  %81 = vmatpush.msra.mxu0 0.0
  %82 = vmatpush.msra.mxu0 0.0
  %83 = vmatpush.msra.mxu0 0.0
  %84 = vmatpush.msra.mxu0 0.0
  %85 = vmatpush.msra.mxu0 0.0
  %86 = vmatpush.msra.mxu0 0.0
  %87 = vmatpush.msra.mxu0 0.0
  %88 = vmatpush.msra.mxu0 0.0
  %89 = vmatpush.msra.mxu0 0.0
  %90 = vmatpush.msra.mxu0 0.0
  %91 = vmatpush.msra.mxu0 0.0
  %92 = vmatpush.msra.mxu0 %v35
  %93 = vmatpush.msra.mxu0 %v31
  %94 = vmatpush.msra.mxu0 %v27
  %95 = vmatpush.msra.mxu0 %v23
  %96 = vmatpush.msra.mxu0 %v19
  %97 = vmatmul.f32.gmra.mxu0 %v39
  %v98 = vpop.f32.mrf.mxu0
  %v99 = vadd.f32 0.0, %v98
  %100 = vdwg.mxu0
  %101 = vmatpush.msra.mxu0 0.0
  %102 = vmatpush.msra.mxu0 0.0
  %103 = vmatpush.msra.mxu0 0.0
  %104 = vmatpush.msra.mxu0 0.0
  %105 = vmatpush.msra.mxu0 0.0
  %106 = vmatpush.msra.mxu0 0.0
  %107 = vmatpush.msra.mxu0 0.0
  %108 = vmatpush.msra.mxu0 0.0
  %109 = vmatpush.msra.mxu0 0.0
  %110 = vmatpush.msra.mxu0 0.0
  %111 = vmatpush.msra.mxu0 0.0
  %112 = vmatpush.msra.mxu0 %v36
  %113 = vmatpush.msra.mxu0 %v32
  %114 = vmatpush.msra.mxu0 %v28
  %115 = vmatpush.msra.mxu0 %v24
  %116 = vmatpush.msra.mxu0 %v20
  %117 = vmatmul.f32.gmra.mxu0 %v39
  %v118 = vpop.f32.mrf.mxu0
  %v119 = vadd.f32 0.0, %v118
  %120 = vdwg.mxu0
  %v121 = vadd.f32 %v59, %v79
  %122 = vadd.xlane.f32.xlu0 %v121
  %v123 = vpop.xlane.xlu0 %122
  %v124 = vrot.slane %v123, 4
  %v125 = vadd.f32 %v123, %v124
  %v126 = vrot.slane %v125, 2
  %v127 = vadd.f32 %v125, %v126
  %v128 = vrot.slane %v127, 1
  %v129 = vadd.f32 %v127, %v128
  %s130 = vtos %v129
  %s131 = smul.f32 %s130, 0.00048828125
  %v132 = vstv %s131
  %v133 = vsub.f32 %v59, %v132
  %v134 = vsub.f32 %v79, %v132
  %v135 = vmul.f32 %v133, %v133
  %v136 = vmul.f32 %v134, %v134
  %v137 = vadd.f32 %v135, %v136
  %138 = vadd.xlane.f32.xlu0 %v137
  %v139 = vpop.xlane.xlu0 %138
  %v140 = vrot.slane %v139, 4
  %v141 = vadd.f32 %v139, %v140
  %v142 = vrot.slane %v141, 2
  %v143 = vadd.f32 %v141, %v142
  %v144 = vrot.slane %v143, 1
  %v145 = vadd.f32 %v143, %v144
  %s146 = vtos %v145
  %s147 = smul.f32 %s146, 0.00048828125
  %s148 = sadd.f32 %s147, 1e-05
  %v149 = vstv %s148
  %v150 = vrsqrt.pop %v149
  %v151 = vmul.f32 %v150, %v149
  %v152 = vmul.f32 %v151, %v150
  %v153 = vmul.f32 0.5, %v152
  %v154 = vsub.f32 1.5, %v153
  %v155 = vmul.f32 %v150, %v154
  %vm156 = vweird.f32 %v149
  %vm157 = vweird.f32 %v150
  %vm158 = vmor %vm156, %vm157
  %v159 = vsel %vm158, %v150, %v155
  %s160 = vtos %v159
  %v161 = vstv %s160
  %v162 = vmul.f32 %v133, %v161
  %v163 = vmul.f32 %v134, %v161
  %vm164 = vcmp.gt.f32.partialorder %v162, 0.0
  %vm165 = vcmp.gt.f32.partialorder %v163, 0.0
  %v166 = vstv %s15
  %v167 = vsel %vm164, 1.0, %v166
  %v168 = vsel %vm165, 1.0, %v166
  %v169 = vmul.f32 %v162, %v167
  %v170 = vmul.f32 %v163, %v168
  %171 = vst [vmem:[%s3] sm:$0xff] %v169
  %172 = vst [vmem:[%s3 + $0x8] sm:$0xff] %v170
  %v173 = vadd.f32 %v99, %v119
  %174 = vadd.xlane.f32.xlu0 %v173
  %v175 = vpop.xlane.xlu0 %174
  %v176 = vrot.slane %v175, 4
  %v177 = vadd.f32 %v175, %v176
  %v178 = vrot.slane %v177, 2
  %v179 = vadd.f32 %v177, %v178
  %v180 = vrot.slane %v179, 1
  %v181 = vadd.f32 %v179, %v180
  %s182 = vtos %v181
  %s183 = smul.f32 %s182, 0.00048828125
  %v184 = vstv %s183
  %v185 = vsub.f32 %v99, %v184
  %v186 = vsub.f32 %v119, %v184
  %v187 = vmul.f32 %v185, %v185
  %v188 = vmul.f32 %v186, %v186
  %v189 = vadd.f32 %v187, %v188
  %190 = vadd.xlane.f32.xlu0 %v189
  %v191 = vpop.xlane.xlu0 %190
  %v192 = vrot.slane %v191, 4
  %v193 = vadd.f32 %v191, %v192
  %v194 = vrot.slane %v193, 2
  %v195 = vadd.f32 %v193, %v194
  %v196 = vrot.slane %v195, 1
  %v197 = vadd.f32 %v195, %v196
  %s198 = vtos %v197
  %s199 = smul.f32 %s198, 0.00048828125
  %s200 = sadd.f32 %s199, 1e-05
  %v201 = vstv %s200
  %v202 = vrsqrt.pop %v201
  %v203 = vmul.f32 %v202, %v201
  %v204 = vmul.f32 %v203, %v202
  %v205 = vmul.f32 0.5, %v204
  %v206 = vsub.f32 1.5, %v205
  %v207 = vmul.f32 %v202, %v206
  %vm208 = vweird.f32 %v201
  %vm209 = vweird.f32 %v202
  %vm210 = vmor %vm208, %vm209
  %v211 = vsel %vm210, %v202, %v207
  %s212 = vtos %v211
  %v213 = vstv %s212
  %v214 = vmul.f32 %v185, %v213
  %v215 = vmul.f32 %v186, %v213
  %vm216 = vcmp.gt.f32.partialorder %v214, 0.0
  %vm217 = vcmp.gt.f32.partialorder %v215, 0.0
  %v218 = vsel %vm216, 1.0, %v166
  %v219 = vsel %vm217, 1.0, %v166
  %v220 = vmul.f32 %v214, %v218
  %v221 = vmul.f32 %v215, %v219
  %s222 = scalar_lea.vmem %s3, 16
  %223 = vst [vmem:[%s222] sm:$0xff] %v220
  %224 = vst [vmem:[%s222 + $0x8] sm:$0xff] %v221
  // Predicated region
  $region14: #{luconv_forward.1} parent=0 // pred_check
    _
  $region15: #{luconv_forward.1} parent=0 // pred_check_branch
    %226 = sbr.rel (0) target = $region17
  $region16: #{luconv_forward.1} parent=0 // pred_region
    _
  $region17: #{luconv_forward.1} parent=0 // pred_fallthru
    _
  // Predicated region
  $region18: #{luconv_forward.1} parent=0 // pred_check
    _
  $region19: #{luconv_forward.1} parent=0 // pred_check_branch
    %228 = sbr.rel (0) target = $region21
  $region20: #{luconv_forward.1} parent=0 // pred_region
    _
  $region21: #{luconv_forward.1} parent=0 // pred_fallthru
    _

</llo_original>
